<compile_context>
chip_gen: v5e
topology: v5e:2x2
jax: 0.10.0
libtpu: 0.0.40
codegen_flags: <defaults>
</compile_context>

<pallas_src>
import math
from functools import partial

import jax
import jax.numpy as jnp
from jax.experimental import pallas as pl
from jax.experimental.pallas import tpu as pltpu


def _round_up(a, b):
    return (a + b - 1) // b * b


def _ffn_kernel(x_ref, w1_ref, b1_ref, w2_ref, b2_ref, g_ref, beta_ref, mask_ref,
                o_ref, acc_ref, *, d_real, eps, apply_mask, mm_dtype):
    t = pl.program_id(1)

    @pl.when(t == 0)
    def _():
        acc_ref[...] = jnp.zeros_like(acc_ref)

    x = x_ref[...]                                                      # (tm, Dp)

    # linear_1 hidden tile + exact erf-GELU (matches the PyTorch `gelu` helper).
    h = jnp.dot(x.astype(mm_dtype), w1_ref[...],
                preferred_element_type=jnp.float32)                     # (tm, th)
    h = h + b1_ref[...]
    h = h * 0.5 * (1.0 + jax.lax.erf(h * (1.0 / math.sqrt(2.0))))

    # Partial linear_2: accumulate this hidden tile's contribution.
    acc_ref[...] += jnp.dot(h.astype(mm_dtype), w2_ref[...],
                            preferred_element_type=jnp.float32)         # (tm, Dp)

    # Epilogue on the last hidden tile: bias + residual + LayerNorm.
    @pl.when(t == pl.num_programs(1) - 1)
    def _():
        y = acc_ref[...] + b2_ref[...]
        z = y + x.astype(jnp.float32)
        inv_d = 1.0 / float(d_real)
        # Padded feature lanes of z are provably zero (x, W2 cols, b2 padded with 0),
        # so sum/d_real is the true mean.
        u = jnp.sum(z, axis=-1, keepdims=True) * inv_d
        zc = z - u
        if apply_mask:
            zc = zc * mask_ref[...]     # zero padded lanes out of the variance
        s = jnp.sum(zc * zc, axis=-1, keepdims=True) * inv_d
        zn = zc * jax.lax.rsqrt(s + eps)
        o_ref[...] = (g_ref[...] * zn + beta_ref[...]).astype(o_ref.dtype)


def _as_2d_padded(a, rows, cols, dtype):
    """Reshape 1-D params to (1, n); pad/cast only when actually needed."""
    a = a.astype(dtype)
    if a.ndim == 1:
        a = a.reshape(1, -1)
    if a.shape == (rows, cols):
        return a
    return jnp.zeros((rows, cols), dtype).at[:a.shape[0], :a.shape[1]].set(a)


def ffn_forward(x, w1, b1, w2, b2, gamma, beta, *, tm=256, th=512, eps=1e-12,
                matmul_dtype=jnp.float32):
    """x: (B, S, D) float32.  Returns (B, S, D)."""
    B, S, D = x.shape
    H = 4 * D
    N = B * S

    # Lane-dense feature padding (last dims multiples of 128).
    Dp = _round_up(D, 128)

    # Hidden-dim reduction tile (multiple of 128), and Hp a multiple of th.
    th = max(128, _round_up(min(th, _round_up(H, 128)), 128))
    Hp = _round_up(H, th)

    # Row tile: multiple of 8, clamped for tiny inputs, and shrunk so there are
    # >= 2 row grid steps whenever possible (keeps both v7x TCs busy).
    tm = max(8, _round_up(min(tm, _round_up(N, 8)), 8))
    while tm > 8 and (N + tm - 1) // tm < 2:
        tm = max(8, _round_up(tm // 2, 8))
    Np = _round_up(N, tm)

    apply_mask = (Dp != D)

    # Activations: skip the pad copy entirely in the aligned case.
    x_flat = x.reshape(N, D)
    if Np == N and Dp == D:
        x2 = x_flat
    else:
        x2 = jnp.zeros((Np, Dp), x.dtype).at[:N, :D].set(x_flat)

    # Parameters: pad/cast only when needed (this block can be hoisted to
    # one-time parameter setup by the caller; it is a no-op copy when aligned).
    w1p = _as_2d_padded(w1, Dp, Hp, matmul_dtype)
    w2p = _as_2d_padded(w2, Hp, Dp, matmul_dtype)
    b1p = _as_2d_padded(b1, 1, Hp, jnp.float32)
    b2p = _as_2d_padded(b2, 1, Dp, jnp.float32)
    gp = _as_2d_padded(gamma, 1, Dp, jnp.float32)
    bp = _as_2d_padded(beta, 1, Dp, jnp.float32)
    maskp = jnp.zeros((1, Dp), jnp.float32).at[0, :D].set(1.0)

    wsize = jnp.dtype(matmul_dtype).itemsize

    # VMEM budget: weight tiles + x/out double-buffered + accumulator + headroom
    # for the (tm, th) hidden intermediate.  Clamp to the physical VMEM of the
    # running chip minus headroom (64 MiB on v7x, 128 MiB on v5e/v6e).
    est = (2 * tm * Dp * 4          # x (double-buffered)
           + 2 * Dp * th * wsize    # W1 tile (double-buffered)
           + 2 * th * 4             # b1 tile
           + 2 * th * Dp * wsize    # W2 tile (double-buffered)
           + 4 * Dp * 4             # b2, gamma, beta, mask (single-buffered)
           + 2 * tm * Dp * 4        # out (double-buffered)
           + tm * Dp * 4            # accumulator scratch
           + 2 * tm * th * 4)       # hidden intermediate headroom
    try:
        phys_vmem = int(pltpu.get_tpu_info().vmem_capacity_bytes)
    except Exception:
        phys_vmem = 64 << 20        # conservative (v7x per-TC)
    cap = max(phys_vmem - (8 << 20), 16 << 20)
    vmem_limit = min(max(int(1.5 * est) + (8 << 20), 32 << 20), cap)

    n_row_steps = Np // tm
    cost = pl.CostEstimate(
        flops=4 * Np * Dp * Hp,                         # two matmuls, 2*M*K*N each
        transcendentals=Np * Hp + Np,                   # erf + rsqrt
        bytes_accessed=(2 * Np * Dp * 4                 # x in + out
                        + n_row_steps * 2 * Dp * Hp * wsize   # streamed weights
                        + (Hp + 3 * Dp) * 4),
    )

    def _const_spec(shape):
        # Grid-invariant operand: single buffer (double-buffering wastes VMEM).
        return pl.BlockSpec(shape, lambda i, t: (0, 0), pipeline_mode=pl.Buffered(1))

    out = pl.pallas_call(
        partial(_ffn_kernel, d_real=D, eps=eps, apply_mask=apply_mask,
                mm_dtype=matmul_dtype),
        out_shape=jax.ShapeDtypeStruct((Np, Dp), x.dtype),
        grid_spec=pltpu.PrefetchScalarGridSpec(
            num_scalar_prefetch=0,
            grid=(n_row_steps, Hp // th),
            in_specs=[
                pl.BlockSpec((tm, Dp), lambda i, t: (i, 0)),   # x rows (resident over t)
                pl.BlockSpec((Dp, th), lambda i, t: (0, t)),   # W1 column tile
                pl.BlockSpec((1, th), lambda i, t: (0, t)),    # b1 tile
                pl.BlockSpec((th, Dp), lambda i, t: (t, 0)),   # W2 row tile
                _const_spec((1, Dp)),                          # b2
                _const_spec((1, Dp)),                          # LN weight
                _const_spec((1, Dp)),                          # LN bias
                _const_spec((1, Dp)),                          # lane mask
            ],
            out_specs=pl.BlockSpec((tm, Dp), lambda i, t: (i, 0)),
            scratch_shapes=[pltpu.VMEM((tm, Dp), jnp.float32)],
        ),
        compiler_params=pltpu.CompilerParams(
            dimension_semantics=("parallel", "arbitrary"),
            vmem_limit_bytes=vmem_limit),
        cost_estimate=cost,
    )(x2, w1p, b1p, w2p, b2p, gp, bp, maskp)

    if Np == N and Dp == D:
        return out.reshape(B, S, D)
    return out[:N, :D].reshape(B, S, D)


def _ref_forward(x, w1, b1, w2, b2, gamma, beta):
    """Pure-JAX reference mirroring the PyTorch forward (eval mode)."""
    h = x @ w1 + b1
    h = h * 0.5 * (1.0 + jax.lax.erf(h / jnp.sqrt(2.0)))
    y = h @ w2 + b2
    z = y + x
    u = jnp.mean(z, axis=-1, keepdims=True)
    s = jnp.mean((z - u) ** 2, axis=-1, keepdims=True)
    zn = (z - u) / jnp.sqrt(s + 1e-12)
    return gamma * zn + beta


def _make_params(key, D):
    H = 4 * D
    kw1, kb1, kw2, kb2 = jax.random.split(key, 4)
    bound1 = 1.0 / math.sqrt(D)
    w1 = jax.random.uniform(kw1, (D, H), jnp.float32, -bound1, bound1)
    b1 = jax.random.uniform(kb1, (H,), jnp.float32, -bound1, bound1)
    bound2 = 1.0 / math.sqrt(H)
    w2 = jax.random.uniform(kw2, (H, D), jnp.float32, -bound2, bound2)
    b2 = jax.random.uniform(kb2, (D,), jnp.float32, -bound2, bound2)
    gamma = jnp.ones((D,), jnp.float32)
    beta = jnp.zeros((D,), jnp.float32)
    return w1, b1, w2, b2, gamma, beta


if __name__ == "__main__":
    key = jax.random.PRNGKey(0)
    k1, k2, k3, k4 = jax.random.split(key, 4)

    # Test 1: unaligned d_model (D=32) -> padded path, lane mask, 2 row steps.
    B, S, D = 2, 8, 32
    x = jax.random.normal(k1, (B, S, D), dtype=jnp.float32)
    params = _make_params(k2, D)
    out = jax.block_until_ready(ffn_forward(x, *params))
    ref = _ref_forward(x, *params)
    assert out.shape == (B, S, D)
    assert jnp.allclose(out, ref, atol=1e-5, rtol=1e-5), "mismatch vs reference (D=32)"

    # Test 2: aligned d_model (D=128) with th=128 -> no padding copies, 4 H-tiles
    # exercising the accumulator + pl.when epilogue path.
    B2, S2, D2 = 2, 8, 128
    x2 = jax.random.normal(k3, (B2, S2, D2), dtype=jnp.float32)
    params2 = _make_params(k4, D2)
    out2 = jax.block_until_ready(ffn_forward(x2, *params2, th=128))
    ref2 = _ref_forward(x2, *params2)
    assert out2.shape == (B2, S2, D2)
    assert jnp.allclose(out2, ref2, atol=1e-5, rtol=1e-5), "mismatch vs reference (D=128)"

    print("KERNEL_OK")
</pallas_src>

<mosaic_0001>
module attributes {stable_mosaic.version = 11 : i64} {
  func.func @_ffn_kernel(%arg0: i32, %arg1: i32, %arg2: memref<8x128xf32, #tpu.memory_space<vmem>>, %arg3: memref<128x128xf32, #tpu.memory_space<vmem>>, %arg4: memref<1x128xf32, #tpu.memory_space<vmem>>, %arg5: memref<128x128xf32, #tpu.memory_space<vmem>>, %arg6: memref<1x128xf32, #tpu.memory_space<vmem>>, %arg7: memref<1x128xf32, #tpu.memory_space<vmem>>, %arg8: memref<1x128xf32, #tpu.memory_space<vmem>>, %arg9: memref<1x128xf32, #tpu.memory_space<vmem>>, %arg10: memref<8x128xf32, #tpu.memory_space<vmem>>, %arg11: memref<8x128xf32, #tpu.memory_space<vmem>>) attributes {dimension_semantics = [#tpu.dimension_semantics<parallel>, #tpu.dimension_semantics<arbitrary>], iteration_bounds = array<i64: 2, 1>, scalar_prefetch = 0 : i64, scratch_operands = 1 : i64, tpu.core_type = #tpu.core_type<tc>, window_params = [{transform_indices = @transform_0, window_bounds = array<i64: 8, 128>}, {transform_indices = @transform_1, window_bounds = array<i64: 128, 128>}, {transform_indices = @transform_2, window_bounds = array<i64: 1, 128>}, {transform_indices = @transform_3, window_bounds = array<i64: 128, 128>}, {pipeline_mode = #tpu.pipeline_mode<synchronous>, transform_indices = @transform_4, window_bounds = array<i64: 1, 128>}, {pipeline_mode = #tpu.pipeline_mode<synchronous>, transform_indices = @transform_5, window_bounds = array<i64: 1, 128>}, {pipeline_mode = #tpu.pipeline_mode<synchronous>, transform_indices = @transform_6, window_bounds = array<i64: 1, 128>}, {pipeline_mode = #tpu.pipeline_mode<synchronous>, transform_indices = @transform_7, window_bounds = array<i64: 1, 128>}, {transform_indices = @transform_8, window_bounds = array<i64: 8, 128>}]} {
    %c0_i32 = arith.constant 0 : i32
    %0 = arith.cmpi eq, %arg1, %c0_i32 : i32
    %1 = arith.extui %0 : i1 to i32
    %c0_i32_0 = arith.constant 0 : i32
    %2 = arith.cmpi ne, %1, %c0_i32_0 : i32
    scf.if %2 {
      %cst_18 = arith.constant 0.000000e+00 : f32
      %25 = vector.broadcast %cst_18 : f32 to vector<8x128xf32>
      %c0_19 = arith.constant 0 : index
      %c0_20 = arith.constant 0 : index
      %26 = vector.load %arg11[%c0_19, %c0_20] : memref<8x128xf32, #tpu.memory_space<vmem>>, vector<8x128xf32>
      tpu.vector_store %arg11[%c0_19, %c0_20], %25 {strides = array<i32>} : memref<8x128xf32, #tpu.memory_space<vmem>>, vector<8x128xf32>,
    } else {
    }
    %c0 = arith.constant 0 : index
    %c0_1 = arith.constant 0 : index
    %3 = vector.load %arg2[%c0, %c0_1] : memref<8x128xf32, #tpu.memory_space<vmem>>, vector<8x128xf32>
    %c0_2 = arith.constant 0 : index
    %c0_3 = arith.constant 0 : index
    %4 = vector.load %arg3[%c0_2, %c0_3] : memref<128x128xf32, #tpu.memory_space<vmem>>, vector<128x128xf32>
    %cst = arith.constant dense<0.000000e+00> : vector<8x128xf32>
    %5 = tpu.matmul %3, %4, %cst {dimension_numbers = #tpu.dot_dimension_numbers<[1], [0], [0], [1], [0, 0, 1, 1], [], []>} : vector<8x128xf32>, vector<128x128xf32>, vector<8x128xf32> -> vector<8x128xf32>
    %c0_4 = arith.constant 0 : index
    %c0_5 = arith.constant 0 : index
    %6 = vector.load %arg4[%c0_4, %c0_5] : memref<1x128xf32, #tpu.memory_space<vmem>>, vector<1x128xf32>
    %7 = vector.broadcast %6 : vector<1x128xf32> to vector<8x128xf32>
    %8 = arith.addf %5, %7 : vector<8x128xf32>
    %cst_6 = arith.constant 5.000000e-01 : f32
    %9 = vector.broadcast %cst_6 : f32 to vector<8x128xf32>
    %10 = arith.mulf %8, %9 : vector<8x128xf32>
    %cst_7 = arith.constant 0.707106769 : f32
    %11 = vector.broadcast %cst_7 : f32 to vector<8x128xf32>
    %12 = arith.mulf %8, %11 : vector<8x128xf32>
    %13 = math.erf %12 : vector<8x128xf32>
    %cst_8 = arith.constant 1.000000e+00 : f32
    %14 = vector.broadcast %cst_8 : f32 to vector<8x128xf32>
    %15 = arith.addf %14, %13 : vector<8x128xf32>
    %16 = arith.mulf %10, %15 : vector<8x128xf32>
    %c0_9 = arith.constant 0 : index
    %c0_10 = arith.constant 0 : index
    %17 = vector.load %arg11[%c0_9, %c0_10] : memref<8x128xf32, #tpu.memory_space<vmem>>, vector<8x128xf32>
    %c0_11 = arith.constant 0 : index
    %c0_12 = arith.constant 0 : index
    %18 = vector.load %arg5[%c0_11, %c0_12] : memref<128x128xf32, #tpu.memory_space<vmem>>, vector<128x128xf32>
    %cst_13 = arith.constant dense<0.000000e+00> : vector<8x128xf32>
    %19 = tpu.matmul %16, %18, %cst_13 {dimension_numbers = #tpu.dot_dimension_numbers<[1], [0], [0], [1], [0, 0, 1, 1], [], []>} : vector<8x128xf32>, vector<128x128xf32>, vector<8x128xf32> -> vector<8x128xf32>
    %20 = arith.addf %17, %19 : vector<8x128xf32>
    %c0_14 = arith.constant 0 : index
    %c0_15 = arith.constant 0 : index
    %21 = vector.load %arg11[%c0_14, %c0_15] : memref<8x128xf32, #tpu.memory_space<vmem>>, vector<8x128xf32>
    tpu.vector_store %arg11[%c0_14, %c0_15], %20 {strides = array<i32>} : memref<8x128xf32, #tpu.memory_space<vmem>>, vector<8x128xf32>,
    %c0_i32_16 = arith.constant 0 : i32
    %22 = arith.cmpi eq, %arg1, %c0_i32_16 : i32
    %23 = arith.extui %22 : i1 to i32
    %c0_i32_17 = arith.constant 0 : i32
    %24 = arith.cmpi ne, %23, %c0_i32_17 : i32
    scf.if %24 {
      %c0_18 = arith.constant 0 : index
      %c0_19 = arith.constant 0 : index
      %25 = vector.load %arg11[%c0_18, %c0_19] : memref<8x128xf32, #tpu.memory_space<vmem>>, vector<8x128xf32>
      %c0_20 = arith.constant 0 : index
      %c0_21 = arith.constant 0 : index
      %26 = vector.load %arg6[%c0_20, %c0_21] : memref<1x128xf32, #tpu.memory_space<vmem>>, vector<1x128xf32>
      %27 = vector.broadcast %26 : vector<1x128xf32> to vector<8x128xf32>
      %28 = arith.addf %25, %27 : vector<8x128xf32>
      %29 = arith.addf %28, %3 : vector<8x128xf32>
      %cst_22 = arith.constant dense<0.000000e+00> : vector<8xf32>
      %30 = vector.multi_reduction <add>, %29, %cst_22 [1] : vector<8x128xf32> to vector<8xf32>
      %31 = vector.shape_cast %30 : vector<8xf32> to vector<8x1xf32>
      %cst_23 = arith.constant 3.125000e-02 : f32
      %32 = vector.broadcast %cst_23 : f32 to vector<8x1xf32>
      %33 = arith.mulf %31, %32 : vector<8x1xf32>
      %34 = vector.broadcast %33 : vector<8x1xf32> to vector<8x128xf32>
      %35 = arith.subf %29, %34 : vector<8x128xf32>
      %c0_24 = arith.constant 0 : index
      %c0_25 = arith.constant 0 : index
      %36 = vector.load %arg9[%c0_24, %c0_25] : memref<1x128xf32, #tpu.memory_space<vmem>>, vector<1x128xf32>
      %37 = vector.broadcast %36 : vector<1x128xf32> to vector<8x128xf32>
      %38 = arith.mulf %35, %37 : vector<8x128xf32>
      %39 = arith.mulf %38, %38 : vector<8x128xf32>
      %cst_26 = arith.constant dense<0.000000e+00> : vector<8xf32>
      %40 = vector.multi_reduction <add>, %39, %cst_26 [1] : vector<8x128xf32> to vector<8xf32>
      %41 = vector.shape_cast %40 : vector<8xf32> to vector<8x1xf32>
      %cst_27 = arith.constant 3.125000e-02 : f32
      %42 = vector.broadcast %cst_27 : f32 to vector<8x1xf32>
      %43 = arith.mulf %41, %42 : vector<8x1xf32>
      %cst_28 = arith.constant 9.99999996E-13 : f32
      %44 = vector.broadcast %cst_28 : f32 to vector<8x1xf32>
      %45 = arith.addf %43, %44 : vector<8x1xf32>
      %46 = math.rsqrt %45 : vector<8x1xf32>
      %47 = vector.broadcast %46 : vector<8x1xf32> to vector<8x128xf32>
      %48 = arith.mulf %38, %47 : vector<8x128xf32>
      %c0_29 = arith.constant 0 : index
      %c0_30 = arith.constant 0 : index
      %49 = vector.load %arg7[%c0_29, %c0_30] : memref<1x128xf32, #tpu.memory_space<vmem>>, vector<1x128xf32>
      %50 = vector.broadcast %49 : vector<1x128xf32> to vector<8x128xf32>
      %51 = arith.mulf %50, %48 : vector<8x128xf32>
      %c0_31 = arith.constant 0 : index
      %c0_32 = arith.constant 0 : index
      %52 = vector.load %arg8[%c0_31, %c0_32] : memref<1x128xf32, #tpu.memory_space<vmem>>, vector<1x128xf32>
      %53 = vector.broadcast %52 : vector<1x128xf32> to vector<8x128xf32>
      %54 = arith.addf %51, %53 : vector<8x128xf32>
      %c0_33 = arith.constant 0 : index
      %c0_34 = arith.constant 0 : index
      %55 = vector.load %arg10[%c0_33, %c0_34] : memref<8x128xf32, #tpu.memory_space<vmem>>, vector<8x128xf32>
      tpu.vector_store %arg10[%c0_33, %c0_34], %54 {strides = array<i32>} : memref<8x128xf32, #tpu.memory_space<vmem>>, vector<8x128xf32>,
    } else {
    }
    return
  }
  func.func @transform_0(%arg0: i32, %arg1: i32) -> (i32, i32) {
    %c0_i32 = arith.constant 0 : i32
    %c0_i32_0 = arith.constant 0 : i32
    return %arg0, %c0_i32 : i32, i32
  }
  func.func @transform_1(%arg0: i32, %arg1: i32) -> (i32, i32) {
    %c0_i32 = arith.constant 0 : i32
    %c0_i32_0 = arith.constant 0 : i32
    return %c0_i32, %arg1 : i32, i32
  }
  func.func @transform_2(%arg0: i32, %arg1: i32) -> (i32, i32) {
    %c0_i32 = arith.constant 0 : i32
    %c0_i32_0 = arith.constant 0 : i32
    return %c0_i32, %arg1 : i32, i32
  }
  func.func @transform_3(%arg0: i32, %arg1: i32) -> (i32, i32) {
    %c0_i32 = arith.constant 0 : i32
    %c0_i32_0 = arith.constant 0 : i32
    return %arg1, %c0_i32 : i32, i32
  }
  func.func @transform_4(%arg0: i32, %arg1: i32) -> (i32, i32) {
    %c0_i32 = arith.constant 0 : i32
    %c0_i32_0 = arith.constant 0 : i32
    %c0_i32_1 = arith.constant 0 : i32
    return %c0_i32, %c0_i32_0 : i32, i32
  }
  func.func @transform_5(%arg0: i32, %arg1: i32) -> (i32, i32) {
    %c0_i32 = arith.constant 0 : i32
    %c0_i32_0 = arith.constant 0 : i32
    %c0_i32_1 = arith.constant 0 : i32
    return %c0_i32, %c0_i32_0 : i32, i32
  }
  func.func @transform_6(%arg0: i32, %arg1: i32) -> (i32, i32) {
    %c0_i32 = arith.constant 0 : i32
    %c0_i32_0 = arith.constant 0 : i32
    %c0_i32_1 = arith.constant 0 : i32
    return %c0_i32, %c0_i32_0 : i32, i32
  }
  func.func @transform_7(%arg0: i32, %arg1: i32) -> (i32, i32) {
    %c0_i32 = arith.constant 0 : i32
    %c0_i32_0 = arith.constant 0 : i32
    %c0_i32_1 = arith.constant 0 : i32
    return %c0_i32, %c0_i32_0 : i32, i32
  }
  func.func @transform_8(%arg0: i32, %arg1: i32) -> (i32, i32) {
    %c0_i32 = arith.constant 0 : i32
    %c0_i32_0 = arith.constant 0 : i32
    return %arg0, %c0_i32 : i32, i32
  }
}

</mosaic_0001>

<llo_original>
// kernel: tpu_custom_call.1
$region0: #{tpu_custom_call.1}
  #allocation0 [shape = 'u32[]', space=smem, size = 0x4, offset = 0x4, fixed_abs, tag = 'smem constant byte address 0x4 - core index']
  #allocation1 [shape = 'u32[72,128]{1,0:T(1,128)}', space=vmem, size = 0x9000, scoped, tag = 'internal scratch']
  #allocation2 [shape = 'f32[8,128]{1,0:T(8,128)}', space=vmem, size = 0x1000, scoped, tag = 'scratch operand']
  %s0 = inlined_call_operand.hbm [shape: f32[16,128], index: 0, kind: input, shape index: {}]
  %s1 = inlined_call_operand.hbm [shape: f32[128,128], index: 1, kind: input, shape index: {}]
  %s2 = inlined_call_operand.vmem [shape: f32[1,128], index: 2, kind: input, shape index: {}]
  %s3 = inlined_call_operand.hbm [shape: f32[128,128], index: 3, kind: input, shape index: {}]
  %s4 = inlined_call_operand.vmem [shape: f32[1,128], index: 4, kind: input, shape index: {}]
  %s5 = inlined_call_operand.vmem [shape: f32[1,128], index: 5, kind: input, shape index: {}]
  %s6 = inlined_call_operand.vmem [shape: f32[1,128], index: 6, kind: input, shape index: {}]
  %s7 = inlined_call_operand.vmem [shape: f32[1,128], index: 7, kind: input, shape index: {}]
  %s8 = inlined_call_operand.hbm [shape: f32[16,128], index: 8, kind: output, shape index: {}]
  %s9 = sld [smem:[#allocation0]]
  $region85: #{tpu_custom_call.1} parent=0
    _
  %s11 = ssub.s32 1, %s9
  %s12 = scalar_select 0, %s11, %s9
  $region1: #{tpu_custom_call.1} parent=0
    #allocation3 [shape = 'u8[8192]{0}', space=vmem, size = 0x2000, scoped, tag = 'input window, operand 0']
    #allocation4 [shape = 's32[2]{0}', space=sflag, size = 0x8, scoped, tag = 'scoped memory for tpu_custom_call.1']
    #allocation5 [shape = 's32[2]{0}', space=sflag, size = 0x8, scoped, tag = 'scoped memory for tpu_custom_call.1']
    #allocation6 [shape = 'u8[65536]{0}', space=vmem, size = 0x10000, scoped, tag = 'input window, operand 1, single buffered']
    #allocation7 [shape = 's32[1]{0}', space=sflag, size = 0x4, scoped, tag = 'scoped memory for tpu_custom_call.1']
    #allocation8 [shape = 'u8[65536]{0}', space=vmem, size = 0x10000, scoped, tag = 'input window, operand 3, single buffered']
    #allocation9 [shape = 'u8[8192]{0}', space=vmem, size = 0x2000, scoped, tag = 'output window, operand 0']
    %13 = vsyncpa [#allocation4], 0
    %s14 = scalar_lea.sflag [#allocation4], 1
    %15 = vsyncpa %s14, 0
    %16 = vsyncpa [#allocation7], 0
    %17 = vsyncpa [#allocation5], 0
    %s18 = scalar_lea.sflag [#allocation5], 1
    %19 = vsyncpa %s18, 0
    loop: start=0, step=1, limit=4
    $region2: #{tpu_custom_call.1} parent=1 // loop_pre_header
      _
    $region3: #{tpu_custom_call.1} parent=1 // loop_header
      %s21 = sphi 0, %s25
      %p22 = scmp.ge.s32.totalorder %s21, 4
      %s28 = sphi 0, %s40
      %s29 = sphi 0, %s36
      %s30 = sphi 0, %s28
      %s31 = sphi 0, %s29
      %s32 = sphi 0, %s30
      %s33 = sphi 0, %s31
      %s43 = sphi 0, %s45
      %s46 = sphi 0, %s43
      %s47 = sphi 0, %s46
      %s63 = sphi 0, %s47
      %s69 = sphi 0, %s71
      %s72 = sphi 0, %s69
      %s73 = sphi 0, %s72
      %s89 = sphi 0, %s73
      %s95 = sphi 0, %s97
      %s98 = sphi 0, %s95
      %s99 = sphi 0, %s98
      %s115 = sphi 0, %s99
      %s121 = sphi 0, %s123
      %s124 = sphi 0, %s121
      %s125 = sphi 0, %s124
      %s141 = sphi 0, %s125
      %s145 = sphi 0, %s145
      %s147 = sphi 0, %s145
      %s148 = sphi 0, %s147
      %s162 = sphi 0, %s148
      %s166 = sphi 0, %s166
      %s168 = sphi 0, %s166
      %s169 = sphi 0, %s168
      %s183 = sphi 0, %s169
      %s187 = sphi 0, %s187
      %s189 = sphi 0, %s187
      %s190 = sphi 0, %s189
      %s204 = sphi 0, %s190
      %s208 = sphi 0, %s208
      %s210 = sphi 0, %s208
      %s211 = sphi 0, %s210
      %s225 = sphi 0, %s211
      %s231 = sphi 0, %s233
      %s234 = sphi 0, %s231
      %s235 = sphi 0, %s234
      %s251 = sphi 0, %s235
    $region4: #{tpu_custom_call.1} parent=1 // loop_header_branch
      %24 = sbr.rel (%p22) target = $region8
    $region5: #{tpu_custom_call.1} parent=1 // loop_body
      %s26 = ssub.s32 %s21, 1
      %s27 = ssub.s32 %s21, 2
      %s34 = sadd.s32 1, %s29
      %p35 = scmp.ge.s32.totalorder %s34, 1
      %s36 = scalar_select %p35, 0, %s34
      %s37 = sadd.s32 1, %s28
      %s38 = scalar_select %p35, %s37, %s28
      %p39 = scmp.ge.s32.totalorder %s38, 2
      %s40 = scalar_select %p39, 0, %s38
      %s41 = ssub.s32 %s28, %s40
      %p42 = scmp.eq.s32.totalorder %s41, 0
      %s44 = sadd.s32 %s43, 1
      %s45 = scalar_select %p42, %s43, %s44
      %p48 = pneg %p42
      %p49 = scmp.eq.s32.totalorder %s21, 1
      %p50 = por %p48, %p49
      %p51 = scmp.ne.s32.totalorder %s43, %s46
      %p52 = scmp.eq.s32.totalorder %s21, 0
      %p53 = por %p51, %p52
      %p54 = scmp.ne.s32.totalorder %s43, %s46
      %p55 = scmp.eq.s32.totalorder %s26, 1
      %p56 = por %p54, %p55
      %p57 = scmp.ne.s32.totalorder %s46, %s47
      %p58 = scmp.eq.s32.totalorder %s26, 0
      %p59 = por %p57, %p58
      %p60 = scmp.ne.s32.totalorder %s46, %s47
      %p61 = scmp.eq.s32.totalorder %s27, 1
      %p62 = por %p60, %p61
      %p64 = scmp.ne.s32.totalorder %s47, %s63
      %p65 = scmp.eq.s32.totalorder %s27, 0
      %p66 = por %p64, %p65
      %s67 = ssub.s32 %s29, %s36
      %p68 = scmp.eq.s32.totalorder %s67, 0
      %s70 = sadd.s32 %s69, 1
      %s71 = scalar_select %p68, %s69, %s70
      %p74 = pneg %p68
      %p75 = scmp.eq.s32.totalorder %s21, 1
      %p76 = por %p74, %p75
      %p77 = scmp.ne.s32.totalorder %s69, %s72
      %p78 = scmp.eq.s32.totalorder %s21, 0
      %p79 = por %p77, %p78
      %p80 = scmp.ne.s32.totalorder %s69, %s72
      %p81 = scmp.eq.s32.totalorder %s26, 1
      %p82 = por %p80, %p81
      %p83 = scmp.ne.s32.totalorder %s72, %s73
      %p84 = scmp.eq.s32.totalorder %s26, 0
      %p85 = por %p83, %p84
      %p86 = scmp.ne.s32.totalorder %s72, %s73
      %p87 = scmp.eq.s32.totalorder %s27, 1
      %p88 = por %p86, %p87
      %p90 = scmp.ne.s32.totalorder %s73, %s89
      %p91 = scmp.eq.s32.totalorder %s27, 0
      %p92 = por %p90, %p91
      %s93 = ssub.s32 %s29, %s36
      %p94 = scmp.eq.s32.totalorder %s93, 0
      %s96 = sadd.s32 %s95, 1
      %s97 = scalar_select %p94, %s95, %s96
      %p100 = pneg %p94
      %p101 = scmp.eq.s32.totalorder %s21, 1
      %p102 = por %p100, %p101
      %p103 = scmp.ne.s32.totalorder %s95, %s98
      %p104 = scmp.eq.s32.totalorder %s21, 0
      %p105 = por %p103, %p104
      %p106 = scmp.ne.s32.totalorder %s95, %s98
      %p107 = scmp.eq.s32.totalorder %s26, 1
      %p108 = por %p106, %p107
      %p109 = scmp.ne.s32.totalorder %s98, %s99
      %p110 = scmp.eq.s32.totalorder %s26, 0
      %p111 = por %p109, %p110
      %p112 = scmp.ne.s32.totalorder %s98, %s99
      %p113 = scmp.eq.s32.totalorder %s27, 1
      %p114 = por %p112, %p113
      %p116 = scmp.ne.s32.totalorder %s99, %s115
      %p117 = scmp.eq.s32.totalorder %s27, 0
      %p118 = por %p116, %p117
      %s119 = ssub.s32 %s29, %s36
      %p120 = scmp.eq.s32.totalorder %s119, 0
      %s122 = sadd.s32 %s121, 1
      %s123 = scalar_select %p120, %s121, %s122
      %p126 = pneg %p120
      %p127 = scmp.eq.s32.totalorder %s21, 1
      %p128 = por %p126, %p127
      %p129 = scmp.ne.s32.totalorder %s121, %s124
      %p130 = scmp.eq.s32.totalorder %s21, 0
      %p131 = por %p129, %p130
      %p132 = scmp.ne.s32.totalorder %s121, %s124
      %p133 = scmp.eq.s32.totalorder %s26, 1
      %p134 = por %p132, %p133
      %p135 = scmp.ne.s32.totalorder %s124, %s125
      %p136 = scmp.eq.s32.totalorder %s26, 0
      %p137 = por %p135, %p136
      %p138 = scmp.ne.s32.totalorder %s124, %s125
      %p139 = scmp.eq.s32.totalorder %s27, 1
      %p140 = por %p138, %p139
      %p142 = scmp.ne.s32.totalorder %s125, %s141
      %p143 = scmp.eq.s32.totalorder %s27, 0
      %p144 = por %p142, %p143
      %s146 = sadd.s32 %s145, 1
      %p149 = scmp.eq.s32.totalorder %s21, 1
      %p150 = scmp.ne.s32.totalorder %s145, %s147
      %p151 = scmp.eq.s32.totalorder %s21, 0
      %p152 = por %p150, %p151
      %p153 = scmp.ne.s32.totalorder %s145, %s147
      %p154 = scmp.eq.s32.totalorder %s26, 1
      %p155 = por %p153, %p154
      %p156 = scmp.ne.s32.totalorder %s147, %s148
      %p157 = scmp.eq.s32.totalorder %s26, 0
      %p158 = por %p156, %p157
      %p159 = scmp.ne.s32.totalorder %s147, %s148
      %p160 = scmp.eq.s32.totalorder %s27, 1
      %p161 = por %p159, %p160
      %p163 = scmp.ne.s32.totalorder %s148, %s162
      %p164 = scmp.eq.s32.totalorder %s27, 0
      %p165 = por %p163, %p164
      %s167 = sadd.s32 %s166, 1
      %p170 = scmp.eq.s32.totalorder %s21, 1
      %p171 = scmp.ne.s32.totalorder %s166, %s168
      %p172 = scmp.eq.s32.totalorder %s21, 0
      %p173 = por %p171, %p172
      %p174 = scmp.ne.s32.totalorder %s166, %s168
      %p175 = scmp.eq.s32.totalorder %s26, 1
      %p176 = por %p174, %p175
      %p177 = scmp.ne.s32.totalorder %s168, %s169
      %p178 = scmp.eq.s32.totalorder %s26, 0
      %p179 = por %p177, %p178
      %p180 = scmp.ne.s32.totalorder %s168, %s169
      %p181 = scmp.eq.s32.totalorder %s27, 1
      %p182 = por %p180, %p181
      %p184 = scmp.ne.s32.totalorder %s169, %s183
      %p185 = scmp.eq.s32.totalorder %s27, 0
      %p186 = por %p184, %p185
      %s188 = sadd.s32 %s187, 1
      %p191 = scmp.eq.s32.totalorder %s21, 1
      %p192 = scmp.ne.s32.totalorder %s187, %s189
      %p193 = scmp.eq.s32.totalorder %s21, 0
      %p194 = por %p192, %p193
      %p195 = scmp.ne.s32.totalorder %s187, %s189
      %p196 = scmp.eq.s32.totalorder %s26, 1
      %p197 = por %p195, %p196
      %p198 = scmp.ne.s32.totalorder %s189, %s190
      %p199 = scmp.eq.s32.totalorder %s26, 0
      %p200 = por %p198, %p199
      %p201 = scmp.ne.s32.totalorder %s189, %s190
      %p202 = scmp.eq.s32.totalorder %s27, 1
      %p203 = por %p201, %p202
      %p205 = scmp.ne.s32.totalorder %s190, %s204
      %p206 = scmp.eq.s32.totalorder %s27, 0
      %p207 = por %p205, %p206
      %s209 = sadd.s32 %s208, 1
      %p212 = scmp.eq.s32.totalorder %s21, 1
      %p213 = scmp.ne.s32.totalorder %s208, %s210
      %p214 = scmp.eq.s32.totalorder %s21, 0
      %p215 = por %p213, %p214
      %p216 = scmp.ne.s32.totalorder %s208, %s210
      %p217 = scmp.eq.s32.totalorder %s26, 1
      %p218 = por %p216, %p217
      %p219 = scmp.ne.s32.totalorder %s210, %s211
      %p220 = scmp.eq.s32.totalorder %s26, 0
      %p221 = por %p219, %p220
      %p222 = scmp.ne.s32.totalorder %s210, %s211
      %p223 = scmp.eq.s32.totalorder %s27, 1
      %p224 = por %p222, %p223
      %p226 = scmp.ne.s32.totalorder %s211, %s225
      %p227 = scmp.eq.s32.totalorder %s27, 0
      %p228 = por %p226, %p227
      %s229 = ssub.s32 %s28, %s40
      %p230 = scmp.eq.s32.totalorder %s229, 0
      %s232 = sadd.s32 %s231, 1
      %s233 = scalar_select %p230, %s231, %s232
      %p236 = pneg %p230
      %p237 = scmp.eq.s32.totalorder %s21, 1
      %p238 = por %p236, %p237
      %p239 = scmp.ne.s32.totalorder %s231, %s234
      %p240 = scmp.eq.s32.totalorder %s21, 0
      %p241 = por %p239, %p240
      %p242 = scmp.ne.s32.totalorder %s231, %s234
      %p243 = scmp.eq.s32.totalorder %s26, 1
      %p244 = por %p242, %p243
      %p245 = scmp.ne.s32.totalorder %s234, %s235
      %p246 = scmp.eq.s32.totalorder %s26, 0
      %p247 = por %p245, %p246
      %p248 = scmp.ne.s32.totalorder %s234, %s235
      %p249 = scmp.eq.s32.totalorder %s27, 1
      %p250 = por %p248, %p249
      %p252 = scmp.ne.s32.totalorder %s235, %s251
      %p253 = scmp.eq.s32.totalorder %s27, 0
      %p254 = por %p252, %p253
      %p255 = scmp.le.s32.totalorder 1, %s21
      %p256 = scmp.lt.s32.totalorder %s21, 3
      %p257 = pnand %p255, %p256
      %p258 = pneg %p257
      // Predicated region
      $region9: #{tpu_custom_call.1} parent=5 // pred_check
        _
      $region10: #{tpu_custom_call.1} parent=5 // pred_check_branch
        %260 = sbr.rel (%p257) target = $region12
      $region11: #{tpu_custom_call.1} parent=5 // pred_region
        %s261 = ssub.s32 %s21, 1
        // Predicated region
        $region13: #{tpu_custom_call.1} parent=11 // pred_check
          %p262 = pneg %p85
        $region14: #{tpu_custom_call.1} parent=11 // pred_check_branch
          %264 = sbr.rel (%p262) target = $region16
        $region15: #{tpu_custom_call.1} parent=11 // pred_region
          %266 = vsyncadd [#allocation7], 0
          %s267 = smul.addr %s31, 8
          %s268 = scalar_lea.hbm %s1, %s267
          %s269 = sshll.u32 %s268, 4
          %s270 = int_to_ptr.hbm [resolvable:$true] %s269
          %s271 = sshll.u32 [#allocation6], 4
          %s272 = int_to_ptr.vmem [resolvable:$true] %s271
          %277 = dma.hbm_to_vmem [thread:$0]  %s270, 2048, %s272, [#allocation7], 128, 128, 8
        $region16: #{tpu_custom_call.1} parent=11 // pred_fallthru
          _
        // Predicated region
        $region17: #{tpu_custom_call.1} parent=11 // pred_check
          %p278 = pneg %p111
        $region18: #{tpu_custom_call.1} parent=11 // pred_check_branch
          %280 = sbr.rel (%p278) target = $region20
        $region19: #{tpu_custom_call.1} parent=11 // pred_region
          %p281 = scmp.lt.s32.totalorder %s31, 0
          %s282 = scalar_select %p281, %s31, 0
          %s283 = scalar_lea.vmem %s2, %s282
        $region20: #{tpu_custom_call.1} parent=11 // pred_fallthru
          _
        // Predicated region
        $region21: #{tpu_custom_call.1} parent=11 // pred_check
          %p284 = pneg %p137
        $region22: #{tpu_custom_call.1} parent=11 // pred_check_branch
          %286 = sbr.rel (%p284) target = $region24
        $region23: #{tpu_custom_call.1} parent=11 // pred_region
          %s287 = smul.u32 16, %s31
          %289 = vsyncadd [#allocation7], 0
          %s290 = smul.addr %s287, 8
          %s291 = scalar_lea.hbm %s3, %s290
          %s292 = sshll.u32 %s291, 4
          %s293 = int_to_ptr.hbm [resolvable:$true] %s292
          %s294 = sshll.u32 [#allocation8], 4
          %s295 = int_to_ptr.vmem [resolvable:$true] %s294
          %300 = dma.hbm_to_vmem [thread:$0]  %s293, 2048, %s295, [#allocation7], 128, 128, 8
        $region24: #{tpu_custom_call.1} parent=11 // pred_fallthru
          _
        // Predicated region
        $region25: #{tpu_custom_call.1} parent=11 // pred_check
          %p301 = pneg %p158
        $region26: #{tpu_custom_call.1} parent=11 // pred_check_branch
          %303 = sbr.rel (%p301) target = $region28
        $region27: #{tpu_custom_call.1} parent=11 // pred_region
          _
        $region28: #{tpu_custom_call.1} parent=11 // pred_fallthru
          _
        // Predicated region
        $region29: #{tpu_custom_call.1} parent=11 // pred_check
          %p304 = pneg %p179
        $region30: #{tpu_custom_call.1} parent=11 // pred_check_branch
          %306 = sbr.rel (%p304) target = $region32
        $region31: #{tpu_custom_call.1} parent=11 // pred_region
          _
        $region32: #{tpu_custom_call.1} parent=11 // pred_fallthru
          _
        // Predicated region
        $region33: #{tpu_custom_call.1} parent=11 // pred_check
          %p307 = pneg %p200
        $region34: #{tpu_custom_call.1} parent=11 // pred_check_branch
          %309 = sbr.rel (%p307) target = $region36
        $region35: #{tpu_custom_call.1} parent=11 // pred_region
          _
        $region36: #{tpu_custom_call.1} parent=11 // pred_fallthru
          _
        // Predicated region
        $region37: #{tpu_custom_call.1} parent=11 // pred_check
          %p310 = pneg %p221
        $region38: #{tpu_custom_call.1} parent=11 // pred_check_branch
          %312 = sbr.rel (%p310) target = $region40
        $region39: #{tpu_custom_call.1} parent=11 // pred_region
          _
        $region40: #{tpu_custom_call.1} parent=11 // pred_fallthru
          _
      $region12: #{tpu_custom_call.1} parent=5 // pred_fallthru
        _
      %p313 = scmp.lt.s32.totalorder %s21, 2
      // Predicated region
      $region41: #{tpu_custom_call.1} parent=5 // pred_check
        %p314 = pneg %p313
      $region42: #{tpu_custom_call.1} parent=5 // pred_check_branch
        %316 = sbr.rel (%p314) target = $region44
      $region43: #{tpu_custom_call.1} parent=5 // pred_region
        // Predicated region
        $region45: #{tpu_custom_call.1} parent=43 // pred_check
          %p317 = pneg %p53
        $region46: #{tpu_custom_call.1} parent=43 // pred_check_branch
          %319 = sbr.rel (%p317) target = $region48
        $region47: #{tpu_custom_call.1} parent=43 // pred_region
          %s320 = sand.u32 %s43, 1
          %s321 = scalar_lea.sflag [#allocation4], %s320
          %s322 = sand.u32 %s43, 1
          %s323 = smul.addr %s322, 8
          %s324 = scalar_lea.vmem [#allocation3], %s323
          %326 = vsyncadd %s321, 0
          %s327 = smul.addr %s28, 8
          %s328 = scalar_lea.hbm %s0, %s327
          %s330 = sshll.u32 %s328, 4
          %s331 = int_to_ptr.hbm [resolvable:$true] %s330
          %s332 = sshll.u32 %s324, 4
          %s333 = int_to_ptr.vmem [resolvable:$true] %s332
          %335 = dma.hbm_to_vmem [thread:$0]  %s331, 128, %s333, %s321
        $region48: #{tpu_custom_call.1} parent=43 // pred_fallthru
          _
      $region44: #{tpu_custom_call.1} parent=5 // pred_fallthru
        _
      %p336 = scmp.le.s32.totalorder 1, %s21
      %p337 = scmp.lt.s32.totalorder %s21, 3
      %p338 = pnand %p336, %p337
      %p339 = pneg %p338
      // Predicated region
      $region49: #{tpu_custom_call.1} parent=5 // pred_check
        _
      $region50: #{tpu_custom_call.1} parent=5 // pred_check_branch
        %341 = sbr.rel (%p338) target = $region52
      $region51: #{tpu_custom_call.1} parent=5 // pred_region
        %s342 = ssub.s32 %s21, 1
        %s343 = sand.u32 %s46, 1
        %s344 = scalar_lea.sflag [#allocation4], %s343
        %s345 = sand.u32 %s46, 1
        %s346 = smul.addr %s345, 8
        %s347 = scalar_lea.vmem [#allocation3], %s346
        // Predicated region
        $region53: #{tpu_custom_call.1} parent=51 // pred_check
          %p348 = pneg %p59
        $region54: #{tpu_custom_call.1} parent=51 // pred_check_branch
          %350 = sbr.rel (%p348) target = $region56
        $region55: #{tpu_custom_call.1} parent=51 // pred_region
          %352 = dma.done %s344, 128
        $region56: #{tpu_custom_call.1} parent=51 // pred_fallthru
          _
        // Predicated region
        $region57: #{tpu_custom_call.1} parent=51 // pred_check
          %p353 = pneg %p85
        $region58: #{tpu_custom_call.1} parent=51 // pred_check_branch
          %355 = sbr.rel (%p353) target = $region60
        $region59: #{tpu_custom_call.1} parent=51 // pred_region
          %357 = dma.done [#allocation7], 2048
        $region60: #{tpu_custom_call.1} parent=51 // pred_fallthru
          _
        // Predicated region
        $region61: #{tpu_custom_call.1} parent=51 // pred_check
          %p358 = pneg %p137
        $region62: #{tpu_custom_call.1} parent=51 // pred_check_branch
          %360 = sbr.rel (%p358) target = $region64
        $region63: #{tpu_custom_call.1} parent=51 // pred_region
          %362 = dma.done [#allocation7], 2048
        $region64: #{tpu_custom_call.1} parent=51 // pred_fallthru
          _
        %s363 = sand.u32 %s46, 1
        %s364 = scalar_lea.sflag [#allocation4], %s363
        %s365 = sand.u32 %s46, 1
        %s366 = smul.addr %s365, 8
        %s367 = scalar_lea.vmem [#allocation3], %s366
        %p368 = pneg %p59
        %p369 = pneg %p56
        %p370 = pneg %p85
        %p371 = pneg %p82
        %p372 = scmp.lt.s32.totalorder %s31, 0
        %s373 = scalar_select %p372, %s31, 0
        %s374 = scalar_lea.vmem %s2, %s373
        %p375 = pneg %p111
        %p376 = pneg %p108
        %p377 = pneg %p137
        %p378 = pneg %p134
        %p379 = pneg %p158
        %p380 = pneg %p155
        %p381 = pneg %p179
        %p382 = pneg %p176
        %p383 = pneg %p200
        %p384 = pneg %p197
        %p385 = pneg %p221
        %p386 = pneg %p218
        %p387 = pneg %p247
        %p388 = pneg %p244
        %s389 = sand.u32 %s234, 1
        %s390 = scalar_lea.sflag [#allocation5], %s389
        %s391 = sand.u32 %s234, 1
        %s392 = smul.addr %s391, 8
        %s393 = scalar_lea.vmem [#allocation9], %s392
        %p394 = scmp.lt.s32.totalorder %s31, 0
        %s395 = scalar_select %p394, %s31, 0
        %s396 = scalar_lea.vmem %s2, %s395
        %s397 = smul.u32 16, %s31
        %p398 = scmp.eq.s32.totalorder %s31, 0
        // Predicated region
        $region65: #{tpu_custom_call.1} parent=51 // pred_check
          %p399 = pneg %p398
        $region66: #{tpu_custom_call.1} parent=51 // pred_check_branch
          %401 = sbr.rel (%p399) target = $region68
        $region67: #{tpu_custom_call.1} parent=51 // pred_region
          %402 = vst [vmem:[#allocation2] sm:$0xff] 0.0
        $region68: #{tpu_custom_call.1} parent=51 // pred_fallthru
          _
        %v403 = vld [vmem:[%s347] sm:$0xff]
        %v404 = vld [vmem:[#allocation6] sm:$0xff]
        %v405 = vld [vmem:[#allocation6 + $0x8] sm:$0xff]
        %v406 = vld [vmem:[#allocation6 + $0x10] sm:$0xff]
        %v407 = vld [vmem:[#allocation6 + $0x18] sm:$0xff]
        %v408 = vld [vmem:[#allocation6 + $0x20] sm:$0xff]
        %v409 = vld [vmem:[#allocation6 + $0x28] sm:$0xff]
        %v410 = vld [vmem:[#allocation6 + $0x30] sm:$0xff]
        %v411 = vld [vmem:[#allocation6 + $0x38] sm:$0xff]
        %v412 = vld [vmem:[#allocation6 + $0x40] sm:$0xff]
        %v413 = vld [vmem:[#allocation6 + $0x48] sm:$0xff]
        %v414 = vld [vmem:[#allocation6 + $0x50] sm:$0xff]
        %v415 = vld [vmem:[#allocation6 + $0x58] sm:$0xff]
        %v416 = vld [vmem:[#allocation6 + $0x60] sm:$0xff]
        %v417 = vld [vmem:[#allocation6 + $0x68] sm:$0xff]
        %v418 = vld [vmem:[#allocation6 + $0x70] sm:$0xff]
        %v419 = vld [vmem:[#allocation6 + $0x78] sm:$0xff]
        %v420 = vld [vmem:[%s396] sm:$0x1]
        %v422 = vperm.slane %v420, 0
        %424 = vmatpush.msra.mxu0 %v419
        %425 = vmatpush.msra.mxu0 %v418
        %426 = vmatpush.msra.mxu0 %v417
        %427 = vmatpush.msra.mxu0 %v416
        %428 = vmatpush.msra.mxu0 %v415
        %429 = vmatpush.msra.mxu0 %v414
        %430 = vmatpush.msra.mxu0 %v413
        %431 = vmatpush.msra.mxu0 %v412
        %432 = vmatpush.msra.mxu0 %v411
        %433 = vmatpush.msra.mxu0 %v410
        %434 = vmatpush.msra.mxu0 %v409
        %435 = vmatpush.msra.mxu0 %v408
        %436 = vmatpush.msra.mxu0 %v407
        %437 = vmatpush.msra.mxu0 %v406
        %438 = vmatpush.msra.mxu0 %v405
        %439 = vmatpush.msra.mxu0 %v404
        %440 = vmatmul.f32.gmra.mxu0 %v403
        %v441 = vpop.f32.mrf.mxu0
        %v442 = vadd.f32 %v422, %v441
        %443 = vdwg.mxu0
        %v444 = vmul.f32 %v442, 0.5
        %v445 = vmul.f32 %v442, 0.70710677
        %v446 = vmul.f32 %v445, %v445
        %v447 = vmin.f32 16.0, %v446
        %v448 = vmul.f32 %v447, 2.1237322e-06
        %v449 = vadd.f32 %v448, 0.00028619796
        %v450 = vmul.f32 %v447, %v449
        %v451 = vadd.f32 %v450, 0.0036580483
        %v452 = vmul.f32 %v447, %v451
        %v453 = vadd.f32 %v452, 0.05243302
        %v454 = vmul.f32 %v447, %v453
        %v455 = vadd.f32 %v454, 0.18741608
        %v456 = vmul.f32 %v447, %v455
        %v457 = vadd.f32 %v456, 1.1283791
        %v458 = vmul.f32 %v445, %v457
        %v459 = vmul.f32 %v447, 3.8918573e-05
        %v460 = vadd.f32 %v459, 0.001143296
        %v461 = vmul.f32 %v447, %v460
        %v462 = vadd.f32 %v461, 0.014752088
        %v463 = vmul.f32 %v447, %v462
        %v464 = vadd.f32 %v463, 0.112945676
        %v465 = vmul.f32 %v447, %v464
        %v466 = vadd.f32 %v465, 0.4994258
        %v467 = vmul.f32 %v447, %v466
        %v468 = vadd.f32 %v467, 1.0
        %v469 = vrcp.pop %v468
        %v470 = vmul.f32 %v468, %v469
        %v471 = vsub.f32 1.0, %v470
        %v472 = vmul.f32 %v469, %v471
        %v473 = vadd.f32 %v469, %v472
        %vm474 = vweird.f32 %v468
        %vm475 = vweird.f32 %v469
        %vm476 = vmor %vm474, %vm475
        %v477 = vsel %vm476, %v469, %v473
        %v478 = vand.u32 2147483647, %v468
        %vm479 = vcmp.eq.f32.partialorder %v478, 8.507059e+37
        %v480 = vand.u32 %v468, 2147483648
        %v481 = vor.u32 1.1754944e-38, %v480
        %v482 = vsel %vm479, %v481, %v477
        %v483 = vmul.f32 %v458, %v482
        %v484 = vmin.f32 %v483, 1.0
        %v485 = vmax.f32 %v484, -1.0
        %v486 = vadd.f32 %v485, 1.0
        %v487 = vmul.f32 %v444, %v486
        %v488 = vld [vmem:[#allocation2] sm:$0xff]
        %v489 = vld [vmem:[#allocation8] sm:$0xff]
        %v490 = vld [vmem:[#allocation8 + $0x8] sm:$0xff]
        %v491 = vld [vmem:[#allocation8 + $0x10] sm:$0xff]
        %v492 = vld [vmem:[#allocation8 + $0x18] sm:$0xff]
        %v493 = vld [vmem:[#allocation8 + $0x20] sm:$0xff]
        %v494 = vld [vmem:[#allocation8 + $0x28] sm:$0xff]
        %v495 = vld [vmem:[#allocation8 + $0x30] sm:$0xff]
        %v496 = vld [vmem:[#allocation8 + $0x38] sm:$0xff]
        %v497 = vld [vmem:[#allocation8 + $0x40] sm:$0xff]
        %v498 = vld [vmem:[#allocation8 + $0x48] sm:$0xff]
        %v499 = vld [vmem:[#allocation8 + $0x50] sm:$0xff]
        %v500 = vld [vmem:[#allocation8 + $0x58] sm:$0xff]
        %v501 = vld [vmem:[#allocation8 + $0x60] sm:$0xff]
        %v502 = vld [vmem:[#allocation8 + $0x68] sm:$0xff]
        %v503 = vld [vmem:[#allocation8 + $0x70] sm:$0xff]
        %v504 = vld [vmem:[#allocation8 + $0x78] sm:$0xff]
        %505 = vmatpush.msra.mxu0 %v504
        %506 = vmatpush.msra.mxu0 %v503
        %507 = vmatpush.msra.mxu0 %v502
        %508 = vmatpush.msra.mxu0 %v501
        %509 = vmatpush.msra.mxu0 %v500
        %510 = vmatpush.msra.mxu0 %v499
        %511 = vmatpush.msra.mxu0 %v498
        %512 = vmatpush.msra.mxu0 %v497
        %513 = vmatpush.msra.mxu0 %v496
        %514 = vmatpush.msra.mxu0 %v495
        %515 = vmatpush.msra.mxu0 %v494
        %516 = vmatpush.msra.mxu0 %v493
        %517 = vmatpush.msra.mxu0 %v492
        %518 = vmatpush.msra.mxu0 %v491
        %519 = vmatpush.msra.mxu0 %v490
        %520 = vmatpush.msra.mxu0 %v489
        %521 = vmatmul.f32.gmra.mxu0 %v487
        %v522 = vpop.f32.mrf.mxu0
        %v523 = vadd.f32 0.0, %v522
        %524 = vdwg.mxu0
        %v525 = vadd.f32 %v488, %v523
        %526 = vst [vmem:[#allocation2] sm:$0xff] %v525
        // Predicated region
        $region69: #{tpu_custom_call.1} parent=51 // pred_check
          %p527 = pneg %p398
        $region70: #{tpu_custom_call.1} parent=51 // pred_check_branch
          %529 = sbr.rel (%p527) target = $region72
        $region71: #{tpu_custom_call.1} parent=51 // pred_region
          %v530 = vld [vmem:[#allocation2] sm:$0xff]
          %v531 = vld [vmem:[%s4] sm:$0x1]
          %v533 = vperm.slane %v531, 0
          %v535 = vadd.f32 %v530, %v533
          %v536 = vadd.f32 %v535, %v403
          %537 = vadd.xlane.f32.xlu0 %v536
          %v538 = vpop.xlane.xlu0 %537
          %v539 = vmul.f32 %v538, 0.03125
          %v540 = vsub.f32 %v536, %v539
          %v541 = vld [vmem:[%s7] sm:$0x1]
          %v543 = vperm.slane %v541, 0
          %v545 = vmul.f32 %v540, %v543
          %v546 = vmul.f32 %v545, %v545
          %547 = vadd.xlane.f32.xlu0 %v546
          %v548 = vpop.xlane.xlu0 %547
          %v549 = vmul.f32 %v548, 0.03125
          %v550 = vadd.f32 %v549, 1e-12
          %v551 = vrsqrt.pop %v550
          %v552 = vmul.f32 %v551, %v550
          %v553 = vmul.f32 %v552, %v551
          %v554 = vmul.f32 0.5, %v553
          %v555 = vsub.f32 1.5, %v554
          %v556 = vmul.f32 %v551, %v555
          %vm557 = vweird.f32 %v550
          %vm558 = vweird.f32 %v551
          %vm559 = vmor %vm557, %vm558
          %v560 = vsel %vm559, %v551, %v556
          %v561 = vmul.f32 %v545, %v560
          %v562 = vld [vmem:[%s5] sm:$0x1]
          %v564 = vperm.slane %v562, 0
          %v566 = vmul.f32 %v564, %v561
          %v567 = vld [vmem:[%s6] sm:$0x1]
          %v569 = vperm.slane %v567, 0
          %v571 = vadd.f32 %v566, %v569
          %572 = vst [vmem:[%s393] sm:$0xff] %v571
        $region72: #{tpu_custom_call.1} parent=51 // pred_fallthru
          _
        %s573 = sand.u32 %s234, 1
        %s574 = scalar_lea.sflag [#allocation5], %s573
        %s575 = sand.u32 %s234, 1
        %s576 = smul.addr %s575, 8
        %s577 = scalar_lea.vmem [#allocation9], %s576
        // Predicated region
        $region73: #{tpu_custom_call.1} parent=51 // pred_check
          %p578 = pneg %p244
        $region74: #{tpu_custom_call.1} parent=51 // pred_check_branch
          %580 = sbr.rel (%p578) target = $region76
        $region75: #{tpu_custom_call.1} parent=51 // pred_region
          %582 = vsyncadd %s574, 0
          %s583 = smul.addr %s30, 8
          %s584 = scalar_lea.hbm %s8, %s583
          %s586 = sshll.u32 %s577, 4
          %s587 = int_to_ptr.vmem [resolvable:$true] %s586
          %s588 = sshll.u32 %s584, 4
          %s589 = int_to_ptr.hbm [resolvable:$true] %s588
          %591 = dma.vmem_to_hbm [thread:$0]  %s587, 128, %s589, %s574
        $region76: #{tpu_custom_call.1} parent=51 // pred_fallthru
          _
      $region52: #{tpu_custom_call.1} parent=5 // pred_fallthru
        _
      %p592 = scmp.le.s32.totalorder 2, %s21
      // Predicated region
      $region77: #{tpu_custom_call.1} parent=5 // pred_check
        %p593 = pneg %p592
      $region78: #{tpu_custom_call.1} parent=5 // pred_check_branch
        %595 = sbr.rel (%p593) target = $region80
      $region79: #{tpu_custom_call.1} parent=5 // pred_region
        %s596 = ssub.s32 %s21, 2
        // Predicated region
        $region81: #{tpu_custom_call.1} parent=79 // pred_check
          %p597 = pneg %p250
        $region82: #{tpu_custom_call.1} parent=79 // pred_check_branch
          %599 = sbr.rel (%p597) target = $region84
        $region83: #{tpu_custom_call.1} parent=79 // pred_region
          %s600 = sand.u32 %s235, 1
          %s601 = scalar_lea.sflag [#allocation5], %s600
          %s602 = sand.u32 %s235, 1
          %s603 = smul.addr %s602, 8
          %s604 = scalar_lea.vmem [#allocation9], %s603
          %606 = dma.done %s601, 128
        $region84: #{tpu_custom_call.1} parent=79 // pred_fallthru
          _
      $region80: #{tpu_custom_call.1} parent=5 // pred_fallthru
        _
    $region6: #{tpu_custom_call.1} parent=1 // loop_footer
      %s25 = sadd.s32 1, %s21
    $region7: #{tpu_custom_call.1} parent=1 // loop_footer_branch
      %20 = sbr.rel target = $region3
    $region8: #{tpu_custom_call.1} parent=1 // loop_exit
      _
    %607 = vsyncpa [#allocation4], 1
    %s608 = scalar_lea.sflag [#allocation4], 1
    %609 = vsyncpa %s608, 1
    %610 = vsyncpa [#allocation7], 1
    %611 = vsyncpa [#allocation5], 1
    %s612 = scalar_lea.sflag [#allocation5], 1
    %613 = vsyncpa %s612, 1

</llo_original>
